<compile_context>
chip_gen: v6e
topology: v6e:2x2x1
jax: 0.10.0
libtpu: 0.0.40
codegen_flags: <defaults>
</compile_context>

<pallas_src>
import jax
import jax.numpy as jnp
from jax.experimental import pallas as pl
from jax.experimental.pallas import tpu as pltpu


def _pos_embed_kernel(rows_ref, out_ref):
    # rows_ref: (tile_s, D)      -- embedding-table rows for this seq tile.
    # out_ref:  (tile_b, tile_s, D) -- same rows replicated for every batch
    #           element in this batch tile.
    out_ref[...] = jnp.broadcast_to(rows_ref[...][None, :, :], out_ref.shape)


def _round_up(x, m):
    return ((x + m - 1) // m) * m


def _largest_divisor(n, cap, multiple=1):
    """Largest d with n % d == 0, d % multiple == 0 and d <= cap (or None)."""
    best = None
    for d in range(1, n + 1):
        if d > cap:
            break
        if n % d == 0 and d % multiple == 0:
            best = d
    return best


def _choose_tiles(bsz, padded_seq, embedding_dim, itemsize, sublane):
    row_bytes = embedding_dim * itemsize

    # Input tile (reused across the whole batch loop): keep it <= ~2 MiB so
    # the double-buffered input stays cheap even for huge embedding dims.
    in_cap_rows = max(sublane, ((2 << 20) // max(1, row_bytes)) // sublane * sublane)
    tile_s = _largest_divisor(padded_seq, min(padded_seq, in_cap_rows), sublane)
    if tile_s is None:
        tile_s = sublane  # padded_seq is a multiple of sublane, always divides.

    # Output block: target ~8 MiB so the HBM write dominates the ~0.35 us
    # per-grid-step overhead (review: 2-8 MiB+ blocks -> ~85%+ of roofline).
    target_out_bytes = 8 << 20
    tile_b_cap = max(1, target_out_bytes // max(1, tile_s * row_bytes))
    tile_b = _largest_divisor(bsz, min(bsz, tile_b_cap), 1) or 1
    return tile_b, tile_s


def position_embedding_forward(inputs, table, *, force_kernel=False):
    """inputs: (bsz, seq_length, ...) -- only the leading two dims are used.
    table:  (num_embeddings, embedding_dim) embedding weight.
    Returns (bsz, seq_length, embedding_dim) of the table's dtype."""
    bsz, seq_length = inputs.shape[:2]
    num_embeddings, embedding_dim = table.shape
    assert seq_length <= num_embeddings

    dtype = table.dtype
    itemsize = jnp.dtype(dtype).itemsize

    # Fast path: for tiny outputs the pallas_call launch / pipeline warmup
    # dominates, and XLA can usually fuse the broadcast into the consumer.
    out_bytes = bsz * seq_length * embedding_dim * itemsize
    if not force_kernel and out_bytes < (1 << 20):
        return jnp.broadcast_to(table[:seq_length], (bsz, seq_length, embedding_dim))

    # Sub-32-bit dtypes pack along sublanes: 8 rows (f32), 16 (bf16), 32 (int8).
    sublane = {4: 8, 2: 16, 1: 32}.get(itemsize, 8)
    padded_seq = _round_up(seq_length, sublane)

    # Only rows [0, padded_seq) are ever DMA'd (row tiling via BlockSpec); pad
    # the table itself only if the sublane padding runs past its end.
    if padded_seq > num_embeddings:
        src = jnp.pad(table, ((0, padded_seq - num_embeddings), (0, 0)))
    else:
        src = table

    tile_b, tile_s = _choose_tiles(bsz, padded_seq, embedding_dim, itemsize, sublane)
    num_seq_tiles = padded_seq // tile_s
    num_batch_tiles = bsz // tile_b

    in_tile_bytes = tile_s * embedding_dim * itemsize
    out_tile_bytes = tile_b * in_tile_bytes
    # Double-buffered in + out tiles plus slack; stay well under v7x's 64 MiB.
    vmem_limit = 2 * (in_tile_bytes + out_tile_bytes) + (4 << 20)
    vmem_limit = int(min(max(vmem_limit, 16 << 20), 48 << 20))

    # Batch innermost => the table tile's block index is constant across the
    # inner loop, so Pallas does not re-fetch it.
    grid = (num_seq_tiles, num_batch_tiles)

    out = pl.pallas_call(
        _pos_embed_kernel,
        out_shape=jax.ShapeDtypeStruct((bsz, padded_seq, embedding_dim), dtype),
        grid_spec=pltpu.PrefetchScalarGridSpec(
            num_scalar_prefetch=0,
            grid=grid,
            in_specs=[
                # Only the seq-tile rows of the table; reused across batch.
                pl.BlockSpec((tile_s, embedding_dim), lambda s, b: (s, 0)),
            ],
            out_specs=pl.BlockSpec(
                (tile_b, tile_s, embedding_dim), lambda s, b: (b, s, 0)
            ),
        ),
        compiler_params=pltpu.CompilerParams(
            dimension_semantics=("parallel", "parallel"),
            vmem_limit_bytes=vmem_limit,
        ),
    )(src)

    if padded_seq != seq_length:
        out = out[:, :seq_length]
    return out


if __name__ == "__main__":
    key = jax.random.PRNGKey(0)
    k_in, k_w = jax.random.split(key)

    # Test 1: f32, seq multiple of 8, D = 128 (lane-dense stores).
    bsz, seq_length, feat_dim = 2, 8, 16
    num_embeddings, embedding_dim = 32, 128
    inputs = jax.random.normal(k_in, (bsz, seq_length, feat_dim), dtype=jnp.float32)
    table = jax.random.normal(k_w, (num_embeddings, embedding_dim), dtype=jnp.float32)

    out = jax.block_until_ready(
        position_embedding_forward(inputs, table, force_kernel=True)
    )
    ref = jnp.broadcast_to(table[:seq_length], (bsz, seq_length, embedding_dim))
    assert out.shape == (bsz, seq_length, embedding_dim)
    assert out.dtype == table.dtype
    assert jnp.array_equal(out, ref)

    # Test 2: odd seq length (exercises the sublane-padded seq + slice path).
    bsz2, seq2 = 3, 7
    inputs2 = jnp.zeros((bsz2, seq2, feat_dim), dtype=jnp.float32)
    out2 = jax.block_until_ready(
        position_embedding_forward(inputs2, table, force_kernel=True)
    )
    ref2 = jnp.broadcast_to(table[:seq2], (bsz2, seq2, embedding_dim))
    assert jnp.array_equal(out2, ref2)

    # Test 3: bf16 table (sublane pack = 16 rows).
    table_bf16 = table.astype(jnp.bfloat16)
    out3 = jax.block_until_ready(
        position_embedding_forward(inputs, table_bf16, force_kernel=True)
    )
    ref3 = jnp.broadcast_to(table_bf16[:seq_length], (bsz, seq_length, embedding_dim))
    assert out3.dtype == jnp.bfloat16
    assert jnp.array_equal(out3, ref3)

    print("KERNEL_OK")
</pallas_src>

<mosaic_0001>
module attributes {stable_mosaic.version = 11 : i64} {
  func.func @_pos_embed_kernel(%arg0: i32, %arg1: i32, %arg2: memref<8x128xf32, #tpu.memory_space<vmem>>, %arg3: memref<2x8x128xf32, #tpu.memory_space<vmem>>) attributes {dimension_semantics = [#tpu.dimension_semantics<parallel>, #tpu.dimension_semantics<parallel>], iteration_bounds = array<i64: 1, 1>, scalar_prefetch = 0 : i64, scratch_operands = 0 : i64, tpu.core_type = #tpu.core_type<tc>, window_params = [{transform_indices = @transform_0, window_bounds = array<i64: 8, 128>}, {transform_indices = @transform_1, window_bounds = array<i64: 2, 8, 128>}]} {
    %c0 = arith.constant 0 : index
    %c0_0 = arith.constant 0 : index
    %0 = vector.load %arg2[%c0, %c0_0] : memref<8x128xf32, #tpu.memory_space<vmem>>, vector<8x128xf32>
    %1 = vector.shape_cast %0 : vector<8x128xf32> to vector<1x8x128xf32>
    %2 = vector.shape_cast %1 : vector<1x8x128xf32> to vector<1x8x128xf32>
    %3 = vector.broadcast %2 : vector<1x8x128xf32> to vector<2x8x128xf32>
    %c0_1 = arith.constant 0 : index
    %c0_2 = arith.constant 0 : index
    %c0_3 = arith.constant 0 : index
    %4 = vector.load %arg3[%c0_1, %c0_2, %c0_3] : memref<2x8x128xf32, #tpu.memory_space<vmem>>, vector<2x8x128xf32>
    tpu.vector_store %arg3[%c0_1, %c0_2, %c0_3], %3 {strides = array<i32>} : memref<2x8x128xf32, #tpu.memory_space<vmem>>, vector<2x8x128xf32>,
    return
  }
  func.func @transform_0(%arg0: i32, %arg1: i32) -> (i32, i32) {
    %c0_i32 = arith.constant 0 : i32
    %c0_i32_0 = arith.constant 0 : i32
    return %arg0, %c0_i32 : i32, i32
  }
  func.func @transform_1(%arg0: i32, %arg1: i32) -> (i32, i32, i32) {
    %c0_i32 = arith.constant 0 : i32
    %c0_i32_0 = arith.constant 0 : i32
    return %arg1, %arg0, %c0_i32 : i32, i32, i32
  }
}

</mosaic_0001>

<llo_original>
// kernel: tpu_custom_call.1
$region0: #{tpu_custom_call.1}
  #allocation0 [shape = 'u32[]', space=smem, size = 0x4, offset = 0x4, fixed_abs, tag = 'smem constant byte address 0x4 - core index']
  #allocation1 [shape = 'u32[144,128]{1,0:T(1,128)}', space=vmem, size = 0x12000, scoped, tag = 'internal scratch']
  %s0 = inlined_call_operand.hbm [shape: f32[32,128], index: 0, kind: input, shape index: {}]
  %s1 = inlined_call_operand.hbm [shape: f32[2,8,128], index: 1, kind: output, shape index: {}]
  %s2 = sld [smem:[#allocation0]]
  $region18: #{tpu_custom_call.1} parent=0
    _
  %s4 = ssub.s32 1, %s2
  %s5 = scalar_select 0, %s4, %s2
  $region1: #{tpu_custom_call.1} parent=0
    #allocation2 [shape = 'u8[4096]{0}', space=vmem, size = 0x1000, scoped, tag = 'input window, operand 0, single buffered']
    #allocation3 [shape = 's32[1]{0}', space=sflag, size = 0x4, scoped, tag = 'scoped memory for tpu_custom_call.1']
    #allocation4 [shape = 's32[1]{0}', space=sflag, size = 0x4, scoped, tag = 'scoped memory for tpu_custom_call.1']
    #allocation5 [shape = 'u8[8192]{0}', space=vmem, size = 0x2000, scoped, tag = 'output window, operand 0, single buffered']
    %6 = vsyncpa [#allocation3], 0
    %7 = vsyncpa [#allocation4], 0
    // Predicated region
    $region2: #{tpu_custom_call.1} parent=1 // pred_check
      _
    $region3: #{tpu_custom_call.1} parent=1 // pred_check_branch
      %9 = sbr.rel (0) target = $region5
    $region4: #{tpu_custom_call.1} parent=1 // pred_region
      %s11 = ssub.s32 128, 128
      %12 = vsyncadd [#allocation3], %s11
      %s14 = sshll.u32 [#allocation2], 4
      %s15 = int_to_ptr.vmem [resolvable:$true] %s14
      %17 = dma.hbm_to_vmem [thread:$0]  %s0, 128, %s15, [#allocation3]
    $region5: #{tpu_custom_call.1} parent=1 // pred_fallthru
      _
    // Predicated region
    $region6: #{tpu_custom_call.1} parent=1 // pred_check
      _
    $region7: #{tpu_custom_call.1} parent=1 // pred_check_branch
      %19 = sbr.rel (0) target = $region9
    $region8: #{tpu_custom_call.1} parent=1 // pred_region
      %20 = dma.done [#allocation3], 128
    $region9: #{tpu_custom_call.1} parent=1 // pred_fallthru
      _
    %v21 = vld [vmem:[#allocation2] sm:$0xff]
    %22 = vst [vmem:[#allocation5] sm:$0xff] %v21
    %23 = vst [vmem:[#allocation5 + $0x8] sm:$0xff] %v21
    // Predicated region
    $region10: #{tpu_custom_call.1} parent=1 // pred_check
      _
    $region11: #{tpu_custom_call.1} parent=1 // pred_check_branch
      %25 = sbr.rel (0) target = $region13
    $region12: #{tpu_custom_call.1} parent=1 // pred_region
      %s27 = ssub.s32 256, 256
      %28 = vsyncadd [#allocation4], %s27
      %s29 = sshll.u32 [#allocation5], 4
      %s30 = int_to_ptr.vmem [resolvable:$true] %s29
      %35 = dma.vmem_to_hbm [thread:$0]  %s30, 256, %s1, [#allocation4], 128, 128, 8
    $region13: #{tpu_custom_call.1} parent=1 // pred_fallthru
      _
    // Predicated region
    $region14: #{tpu_custom_call.1} parent=1 // pred_check
      _
    $region15: #{tpu_custom_call.1} parent=1 // pred_check_branch
      %37 = sbr.rel (0) target = $region17
    $region16: #{tpu_custom_call.1} parent=1 // pred_region
      %38 = dma.done [#allocation4], 256
    $region17: #{tpu_custom_call.1} parent=1 // pred_fallthru
      _
    %39 = vsyncpa [#allocation3], 1
    %40 = vsyncpa [#allocation4], 1

</llo_original>
